<compile_context>
chip_gen: v7x
topology: tpu7x:2x2x1
jax: 0.10.0
libtpu: 0.0.40
codegen_flags: <defaults>
</compile_context>

<pallas_src>
import functools

import jax
import jax.numpy as jnp
from jax import lax
from jax.experimental import pallas as pl
from jax.experimental.pallas import tpu as pltpu


def _arff_kernel(x_ref, p_ref, o_ref, *, H, W, GC):
    """One group of G images (G*C channel rows) per grid step.

    x_ref : (GC, HW)        input rows (each row = one channel's full image)
    p_ref : (GC, 12*HW)     packed params:
                             [0:9*HW)       9 tap planes (BN1 scale + boundary
                                            masks already folded in)
                             [9*HW:10*HW)   BN1 bias plane
                             [10*HW:11*HW)  BN2 bias plane
                             [11*HW:11*HW+GC)  block-diag pointwise weight
    o_ref : (GC, HW)        output = x - dsc(x)
    """
    HW = H * W
    x = x_ref[...]                                  # (GC, HW) f32

    def shift(v, s):
        # out[:, q] = v[:, (q + s) mod HW]; wrapped lanes are zeroed by the
        # boundary masks folded into the tap planes.
        return pltpu.roll(v, (-s) % HW, axis=1)

    def tap(t):
        return p_ref[:, t * HW:(t + 1) * HW]        # (GC, HW) vector load

    # Two column shifts reused by all three kernel rows (4 XLU rolls total).
    xl = shift(x, -1)                               # source column w-1
    xr = shift(x, 1)                                # source column w+1

    rt0 = xl * tap(0) + x * tap(1) + xr * tap(2)    # kh = 0 (dh = -1)
    rt1 = xl * tap(3) + x * tap(4) + xr * tap(5)    # kh = 1 (dh =  0)
    rt2 = xl * tap(6) + x * tap(7) + xr * tap(8)    # kh = 2 (dh = +1)

    # Depthwise 3x3 (zero padding handled by the folded masks).
    acc = rt1 + shift(rt0, -W) + shift(rt2, W)

    b1 = p_ref[:, 9 * HW:10 * HW]
    b2 = p_ref[:, 10 * HW:11 * HW]
    pw = p_ref[:, 11 * HW:11 * HW + GC]             # (GC, GC) block-diagonal

    # BN1 bias + ReLU, then block-diagonal pointwise conv on the MXU.
    y = jnp.maximum(acc + b1, 0.0)
    y2 = jnp.dot(pw, y, preferred_element_type=jnp.float32)

    # BN2 bias + fused residual subtraction.
    o_ref[...] = x - (y2 + b2)


def _has_two_tensorcores():
    """Best-effort detection of v7x-class chips (2 TensorCores per chip)."""
    try:
        kind = jax.devices()[0].device_kind.lower()
    except Exception:  # pragma: no cover - never fail kernel setup on this
        return False
    return ("v7" in kind) or ("7x" in kind)


def _pick_grouping(N, C, prefer_multi_step):
    """Pick images-per-step G (and step count) for the fused batch axis.

    Constraints: G divides N; G*C <= 128 sublane rows per step; if the grid
    has more than one step, G*C must be a multiple of 8 (f32 sublane tiling).
    On 2-TC chips we prefer >=2 parallel steps when legally possible.
    """
    legal = [g for g in range(1, N + 1)
             if N % g == 0 and g * C <= 128 and (g == N or (g * C) % 8 == 0)]
    if not legal:
        legal = [1]  # degenerate fallback (very large C); single row-block
    G = max(legal)
    if prefer_multi_step and N // G < 2:
        multi = [g for g in legal if N // g >= 2]
        if multi:
            G = max(multi)
    return G, max(1, N // G)


def adaptive_residual_frequency_filter(x_nchw, dw_w, pw_w, bn1, bn2, eps=1e-5):
    """Forward of AdaptiveResidualFrequencyFilter: x - DSC(x)  (eval-mode BN).

    x_nchw: (N, C, H, W);  dw_w: (C, 1, 3, 3);  pw_w: (C, C, 1, 1)
    bn1/bn2 = (gamma, beta, running_mean, running_var), each (C,)
    """
    N, C, H, W = x_nchw.shape
    HW = H * W
    g1, b1, m1, v1 = bn1
    g2, b2, m2, v2 = bn2

    # Fold eval-mode BN scales into the conv weights; keep per-channel biases.
    s1 = g1 / jnp.sqrt(v1 + eps)
    s2 = g2 / jnp.sqrt(v2 + eps)
    dw = (dw_w[:, 0, :, :].reshape(C, 9) * s1[:, None]).astype(jnp.float32)   # (C, 9)
    b1f = (b1 - m1 * s1).astype(jnp.float32)                                   # (C,)
    pw = (pw_w[:, :, 0, 0] * s2[:, None]).astype(jnp.float32)                  # (C, C)
    b2f = (b2 - m2 * s2).astype(jnp.float32)                                   # (C,)

    # Group size: images per grid step (one step on 1-TC chips when it fits).
    G, steps = _pick_grouping(N, C, prefer_multi_step=_has_two_tensorcores())
    GC = G * C

    # --- Precompute per-lane boundary masks and fold them into the taps. ---
    # Destination-lane validity of each tap, expressed at the pre-row-shift
    # lane position (columns are invariant under the +/-W row shifts; the row
    # masks are pre-shifted accordingly).
    p = jnp.arange(HW, dtype=jnp.int32)
    col = p % W
    row = p // W
    ones = jnp.ones((HW,), jnp.float32)
    col_m = [(col > 0).astype(jnp.float32), ones, (col < W - 1).astype(jnp.float32)]
    row_m = [(row < H - 1).astype(jnp.float32), ones, (row > 0).astype(jnp.float32)]
    lane_mask = jnp.stack([row_m[kh] * col_m[kw]
                           for kh in range(3) for kw in range(3)])             # (9, HW)

    # Pre-broadcast (lane-dense) tap and bias planes, tiled over the group.
    taps = dw[:, :, None] * lane_mask[None, :, :]                              # (C, 9, HW)
    taps = jnp.tile(taps, (G, 1, 1)).reshape(GC, 9 * HW)
    b1_l = jnp.tile(jnp.broadcast_to(b1f[:, None], (C, HW)), (G, 1))           # (GC, HW)
    b2_l = jnp.tile(jnp.broadcast_to(b2f[:, None], (C, HW)), (G, 1))           # (GC, HW)

    # Block-diagonal pointwise weight for the fused group, padded to HW lanes.
    pw_bd = jnp.kron(jnp.eye(G, dtype=jnp.float32), pw)                        # (GC, GC)
    pw_pad = jnp.zeros((GC, HW), jnp.float32).at[:, :GC].set(pw_bd)

    packed = jnp.concatenate([taps, b1_l, b2_l, pw_pad], axis=1)               # (GC, 12*HW)
    packed = packed.astype(jnp.float32)

    # NCHW with batch*channels on the sublane axis, H*W on the lane axis
    # (free, contiguous reshape — no transpose, no pad).
    x = x_nchw.reshape(N * C, HW).astype(jnp.float32)

    out = pl.pallas_call(
        functools.partial(_arff_kernel, H=H, W=W, GC=GC),
        out_shape=jax.ShapeDtypeStruct((N * C, HW), jnp.float32),
        grid=(steps,),
        in_specs=[
            pl.BlockSpec((GC, HW), lambda i: (i, 0)),
            # Constant index_map: packed params are DMA'd once, not per step.
            pl.BlockSpec((GC, 12 * HW), lambda i: (0, 0)),
        ],
        out_specs=pl.BlockSpec((GC, HW), lambda i: (i, 0)),
        compiler_params=pltpu.CompilerParams(
            dimension_semantics=("parallel",)),
    )(x, packed)
    return out.reshape(N, C, H, W)


def _reference(x, dw_w, pw_w, bn1, bn2, eps=1e-5):
    """Plain-JAX reference mirroring the PyTorch module (eval-mode BN)."""
    C = x.shape[1]
    y = lax.conv_general_dilated(
        x, dw_w, window_strides=(1, 1), padding=((1, 1), (1, 1)),
        dimension_numbers=("NCHW", "OIHW", "NCHW"),
        feature_group_count=C)
    g1, b1, m1, v1 = bn1
    y = ((y - m1[None, :, None, None]) / jnp.sqrt(v1[None, :, None, None] + eps)
         * g1[None, :, None, None] + b1[None, :, None, None])
    y = jnp.maximum(y, 0.0)
    y = lax.conv_general_dilated(
        y, pw_w, window_strides=(1, 1), padding="VALID",
        dimension_numbers=("NCHW", "OIHW", "NCHW"))
    g2, b2, m2, v2 = bn2
    y = ((y - m2[None, :, None, None]) / jnp.sqrt(v2[None, :, None, None] + eps)
         * g2[None, :, None, None] + b2[None, :, None, None])
    return x - y


if __name__ == "__main__":
    N, C, H, W = 2, 4, 16, 16

    key = jax.random.PRNGKey(0)
    keys = jax.random.split(key, 11)

    x = jax.random.normal(keys[0], (N, C, H, W), dtype=jnp.float32)

    # Conv weights (PyTorch layouts): depthwise (C,1,3,3), pointwise (C,C,1,1)
    dw_w = jax.random.normal(keys[1], (C, 1, 3, 3), dtype=jnp.float32) * 0.3
    pw_w = jax.random.normal(keys[2], (C, C, 1, 1), dtype=jnp.float32) * 0.3

    # BatchNorm parameters (deterministic, eval-mode running stats)
    bn1 = (
        jax.random.uniform(keys[3], (C,), minval=0.5, maxval=1.5),   # gamma1
        jax.random.normal(keys[4], (C,)) * 0.1,                      # beta1
        jax.random.normal(keys[5], (C,)) * 0.1,                      # running_mean1
        jax.random.uniform(keys[6], (C,), minval=0.5, maxval=1.5),   # running_var1
    )
    bn2 = (
        jax.random.uniform(keys[7], (C,), minval=0.5, maxval=1.5),   # gamma2
        jax.random.normal(keys[8], (C,)) * 0.1,                      # beta2
        jax.random.normal(keys[9], (C,)) * 0.1,                      # running_mean2
        jax.random.uniform(keys[10], (C,), minval=0.5, maxval=1.5),  # running_var2
    )

    out = adaptive_residual_frequency_filter(x, dw_w, pw_w, bn1, bn2)
    out = jax.block_until_ready(out)

    ref = jax.block_until_ready(_reference(x, dw_w, pw_w, bn1, bn2))

    assert out.shape == (N, C, H, W), out.shape
    max_err = float(jnp.max(jnp.abs(out - ref)))
    assert jnp.allclose(out, ref, atol=5e-4, rtol=5e-4), max_err

    print("KERNEL_OK")
</pallas_src>

<mosaic_0001>
module attributes {stable_mosaic.version = 11 : i64} {
  func.func @_arff_kernel(%arg0: i32, %arg1: memref<8x256xf32, #tpu.memory_space<vmem>>, %arg2: memref<8x3072xf32, #tpu.memory_space<vmem>>, %arg3: memref<8x256xf32, #tpu.memory_space<vmem>>) attributes {dimension_semantics = [#tpu.dimension_semantics<parallel>], iteration_bounds = array<i64: 1>, scalar_prefetch = 0 : i64, scratch_operands = 0 : i64, tpu.core_type = #tpu.core_type<tc>, window_params = [{transform_indices = @transform_0, window_bounds = array<i64: 8, 256>}, {pipeline_mode = #tpu.pipeline_mode<synchronous>, transform_indices = @transform_1, window_bounds = array<i64: 8, 3072>}, {transform_indices = @transform_2, window_bounds = array<i64: 8, 256>}]} {
    %c0 = arith.constant 0 : index
    %c0_0 = arith.constant 0 : index
    %0 = vector.load %arg1[%c0, %c0_0] : memref<8x256xf32, #tpu.memory_space<vmem>>, vector<8x256xf32>
    %c1_i32 = arith.constant 1 : i32
    %1 = tpu.dynamic_rotate %0 by %c1_i32 dim 1 : vector<8x256xf32>, i32 -> vector<8x256xf32>
    %c255_i32 = arith.constant 255 : i32
    %2 = tpu.dynamic_rotate %0 by %c255_i32 dim 1 : vector<8x256xf32>, i32 -> vector<8x256xf32>
    %c0_1 = arith.constant 0 : index
    %c0_2 = arith.constant 0 : index
    %3 = vector.load %arg2[%c0_1, %c0_2] : memref<8x3072xf32, #tpu.memory_space<vmem>>, vector<8x256xf32>
    %4 = arith.mulf %1, %3 : vector<8x256xf32>
    %c0_3 = arith.constant 0 : index
    %c256 = arith.constant 256 : index
    %5 = vector.load %arg2[%c0_3, %c256] : memref<8x3072xf32, #tpu.memory_space<vmem>>, vector<8x256xf32>
    %6 = arith.mulf %0, %5 : vector<8x256xf32>
    %7 = arith.addf %4, %6 : vector<8x256xf32>
    %c0_4 = arith.constant 0 : index
    %c512 = arith.constant 512 : index
    %8 = vector.load %arg2[%c0_4, %c512] : memref<8x3072xf32, #tpu.memory_space<vmem>>, vector<8x256xf32>
    %9 = arith.mulf %2, %8 : vector<8x256xf32>
    %10 = arith.addf %7, %9 : vector<8x256xf32>
    %c0_5 = arith.constant 0 : index
    %c768 = arith.constant 768 : index
    %11 = vector.load %arg2[%c0_5, %c768] : memref<8x3072xf32, #tpu.memory_space<vmem>>, vector<8x256xf32>
    %12 = arith.mulf %1, %11 : vector<8x256xf32>
    %c0_6 = arith.constant 0 : index
    %c1024 = arith.constant 1024 : index
    %13 = vector.load %arg2[%c0_6, %c1024] : memref<8x3072xf32, #tpu.memory_space<vmem>>, vector<8x256xf32>
    %14 = arith.mulf %0, %13 : vector<8x256xf32>
    %15 = arith.addf %12, %14 : vector<8x256xf32>
    %c0_7 = arith.constant 0 : index
    %c1280 = arith.constant 1280 : index
    %16 = vector.load %arg2[%c0_7, %c1280] : memref<8x3072xf32, #tpu.memory_space<vmem>>, vector<8x256xf32>
    %17 = arith.mulf %2, %16 : vector<8x256xf32>
    %18 = arith.addf %15, %17 : vector<8x256xf32>
    %c0_8 = arith.constant 0 : index
    %c1536 = arith.constant 1536 : index
    %19 = vector.load %arg2[%c0_8, %c1536] : memref<8x3072xf32, #tpu.memory_space<vmem>>, vector<8x256xf32>
    %20 = arith.mulf %1, %19 : vector<8x256xf32>
    %c0_9 = arith.constant 0 : index
    %c1792 = arith.constant 1792 : index
    %21 = vector.load %arg2[%c0_9, %c1792] : memref<8x3072xf32, #tpu.memory_space<vmem>>, vector<8x256xf32>
    %22 = arith.mulf %0, %21 : vector<8x256xf32>
    %23 = arith.addf %20, %22 : vector<8x256xf32>
    %c0_10 = arith.constant 0 : index
    %c2048 = arith.constant 2048 : index
    %24 = vector.load %arg2[%c0_10, %c2048] : memref<8x3072xf32, #tpu.memory_space<vmem>>, vector<8x256xf32>
    %25 = arith.mulf %2, %24 : vector<8x256xf32>
    %26 = arith.addf %23, %25 : vector<8x256xf32>
    %c16_i32 = arith.constant 16 : i32
    %27 = tpu.dynamic_rotate %10 by %c16_i32 dim 1 : vector<8x256xf32>, i32 -> vector<8x256xf32>
    %28 = arith.addf %18, %27 : vector<8x256xf32>
    %c240_i32 = arith.constant 240 : i32
    %29 = tpu.dynamic_rotate %26 by %c240_i32 dim 1 : vector<8x256xf32>, i32 -> vector<8x256xf32>
    %30 = arith.addf %28, %29 : vector<8x256xf32>
    %c0_11 = arith.constant 0 : index
    %c2304 = arith.constant 2304 : index
    %31 = vector.load %arg2[%c0_11, %c2304] : memref<8x3072xf32, #tpu.memory_space<vmem>>, vector<8x256xf32>
    %c0_12 = arith.constant 0 : index
    %c2560 = arith.constant 2560 : index
    %32 = vector.load %arg2[%c0_12, %c2560] : memref<8x3072xf32, #tpu.memory_space<vmem>>, vector<8x256xf32>
    %c0_13 = arith.constant 0 : index
    %c2816 = arith.constant 2816 : index
    %33 = vector.load %arg2[%c0_13, %c2816] : memref<8x3072xf32, #tpu.memory_space<vmem>>, vector<8x8xf32>
    %34 = arith.addf %30, %31 : vector<8x256xf32>
    %cst = arith.constant 0.000000e+00 : f32
    %35 = vector.broadcast %cst : f32 to vector<8x256xf32>
    %36 = arith.maximumf %34, %35 : vector<8x256xf32>
    %cst_14 = arith.constant dense<0.000000e+00> : vector<8x256xf32>
    %37 = tpu.matmul %33, %36, %cst_14 {dimension_numbers = #tpu.dot_dimension_numbers<[1], [0], [0], [1], [0, 0, 1, 1], [], []>} : vector<8x8xf32>, vector<8x256xf32>, vector<8x256xf32> -> vector<8x256xf32>
    %38 = arith.addf %37, %32 : vector<8x256xf32>
    %39 = arith.subf %0, %38 : vector<8x256xf32>
    %c0_15 = arith.constant 0 : index
    %c0_16 = arith.constant 0 : index
    %40 = vector.load %arg3[%c0_15, %c0_16] : memref<8x256xf32, #tpu.memory_space<vmem>>, vector<8x256xf32>
    tpu.vector_store %arg3[%c0_15, %c0_16], %39 {strides = array<i32>} : memref<8x256xf32, #tpu.memory_space<vmem>>, vector<8x256xf32>,
    return
  }
  func.func @transform_0(%arg0: i32) -> (i32, i32) {
    %c0_i32 = arith.constant 0 : i32
    %c0_i32_0 = arith.constant 0 : i32
    return %arg0, %c0_i32 : i32, i32
  }
  func.func @transform_1(%arg0: i32) -> (i32, i32) {
    %c0_i32 = arith.constant 0 : i32
    %c0_i32_0 = arith.constant 0 : i32
    %c0_i32_1 = arith.constant 0 : i32
    return %c0_i32, %c0_i32_0 : i32, i32
  }
  func.func @transform_2(%arg0: i32) -> (i32, i32) {
    %c0_i32 = arith.constant 0 : i32
    %c0_i32_0 = arith.constant 0 : i32
    return %arg0, %c0_i32 : i32, i32
  }
}

</mosaic_0001>

<llo_original>
// kernel: tpu_custom_call.1
$region0: #{tpu_custom_call.1}
  #allocation0 [shape = 'u32[]', space=smem, size = 0x4, offset = 0x4, fixed_abs, tag = 'smem constant byte address 0x4 - core index']
  #allocation1 [shape = 'u32[144,128]{1,0:T(1,128)}', space=vmem, size = 0x12000, scoped, tag = 'internal scratch']
  %s0 = inlined_call_operand.hbm [shape: f32[8,256], index: 0, kind: input, shape index: {}]
  %s1 = inlined_call_operand.hbm [shape: f32[8,3072], index: 1, kind: input, shape index: {}]
  %s2 = inlined_call_operand.hbm [shape: f32[8,256], index: 2, kind: output, shape index: {}]
  %s3 = sld [smem:[#allocation0]]
  $region26: #{tpu_custom_call.1} parent=0
    _
  %s5 = ssub.s32 1, %s3
  %s6 = scalar_select 0, %s5, %s3
  $region1: #{tpu_custom_call.1} parent=0
    #allocation2 [shape = 'u8[8192]{0}', space=vmem, size = 0x2000, scoped, tag = 'input window, operand 0, single buffered']
    #allocation3 [shape = 's32[1]{0}', space=sflag, size = 0x4, scoped, tag = 'scoped memory for tpu_custom_call.1']
    #allocation4 [shape = 's32[1]{0}', space=sflag, size = 0x4, scoped, tag = 'scoped memory for tpu_custom_call.1']
    #allocation5 [shape = 'u8[98304]{0}', space=vmem, size = 0x18000, scoped, tag = 'input window, operand 1, single buffered']
    #allocation6 [shape = 's32[1]{0}', space=sflag, size = 0x4, scoped, tag = 'scoped memory for tpu_custom_call.1']
    #allocation7 [shape = 'u8[8192]{0}', space=vmem, size = 0x2000, scoped, tag = 'output window, operand 0, single buffered']
    %7 = vsyncpa [#allocation3], 0
    %8 = vsyncpa [#allocation6], 0
    %9 = vsyncpa [#allocation4], 0
    // Predicated region
    $region2: #{tpu_custom_call.1} parent=1 // pred_check
      _
    $region3: #{tpu_custom_call.1} parent=1 // pred_check_branch
      %11 = sbr.rel (0) target = $region5
    $region4: #{tpu_custom_call.1} parent=1 // pred_region
      %s13 = ssub.s32 256, 256
      %14 = vsyncadd [#allocation3], %s13
      %s16 = sshll.u32 [#allocation2], 4
      %s17 = int_to_ptr.vmem [resolvable:$true] %s16
      %19 = dma.hbm_to_vmem [thread:$0]  %s0, 256, %s17, [#allocation3]
    $region5: #{tpu_custom_call.1} parent=1 // pred_fallthru
      _
    // Predicated region
    $region6: #{tpu_custom_call.1} parent=1 // pred_check
      _
    $region7: #{tpu_custom_call.1} parent=1 // pred_check_branch
      %21 = sbr.rel (0) target = $region9
    $region8: #{tpu_custom_call.1} parent=1 // pred_region
      %s23 = ssub.s32 3072, 3072
      %24 = vsyncadd [#allocation6], %s23
      %s26 = sshll.u32 [#allocation5], 4
      %s27 = int_to_ptr.vmem [resolvable:$true] %s26
      %29 = dma.hbm_to_vmem [thread:$0]  %s1, 3072, %s27, [#allocation6]
    $region9: #{tpu_custom_call.1} parent=1 // pred_fallthru
      _
    // Predicated region
    $region10: #{tpu_custom_call.1} parent=1 // pred_check
      _
    $region11: #{tpu_custom_call.1} parent=1 // pred_check_branch
      %31 = sbr.rel (0) target = $region13
    $region12: #{tpu_custom_call.1} parent=1 // pred_region
      %32 = dma.done [#allocation3], 256
    $region13: #{tpu_custom_call.1} parent=1 // pred_fallthru
      _
    // Predicated region
    $region14: #{tpu_custom_call.1} parent=1 // pred_check
      _
    $region15: #{tpu_custom_call.1} parent=1 // pred_check_branch
      %34 = sbr.rel (0) target = $region17
    $region16: #{tpu_custom_call.1} parent=1 // pred_region
      %35 = dma.done [#allocation6], 3072
    $region17: #{tpu_custom_call.1} parent=1 // pred_fallthru
      _
    %v36 = vld [vmem:[#allocation2] sm:$0xff]
    %v37 = vld [vmem:[#allocation2 + $0x8] sm:$0xff]
    %38 = vrot.lane.b32.xlu0 %v36, 1
    %v39 = vpop.permute.xlu0 %38
    %40 = vrot.lane.b32.xlu0 %v37, 1
    %v41 = vpop.permute.xlu0 %40
    %v42 = vlaneseq
    %v43 = vand.u32 %v42, 127
    %vm44 = vcmp.lt.s32.totalorder %v43, 1
    %v45 = vsel %vm44, %v39, %v41
    %v46 = vsel %vm44, %v41, %v39
    %47 = vrot.lane.b32.xlu0 %v36, 127
    %v48 = vpop.permute.xlu0 %47
    %49 = vrot.lane.b32.xlu0 %v37, 127
    %v50 = vpop.permute.xlu0 %49
    %vm51 = vcmp.lt.s32.totalorder %v43, 127
    %v52 = vsel %vm51, %v48, %v50
    %v53 = vsel %vm51, %v50, %v48
    %v54 = vld [vmem:[#allocation5] sm:$0xff]
    %v55 = vld [vmem:[#allocation5 + $0x8] sm:$0xff]
    %v56 = vmul.f32 %v46, %v54
    %v57 = vmul.f32 %v45, %v55
    %v58 = vld [vmem:[#allocation5 + $0x10] sm:$0xff]
    %v59 = vld [vmem:[#allocation5 + $0x18] sm:$0xff]
    %v60 = vmul.f32 %v36, %v58
    %v61 = vmul.f32 %v37, %v59
    %v62 = vadd.f32 %v56, %v60
    %v63 = vadd.f32 %v57, %v61
    %v64 = vld [vmem:[#allocation5 + $0x20] sm:$0xff]
    %v65 = vld [vmem:[#allocation5 + $0x28] sm:$0xff]
    %v66 = vmul.f32 %v52, %v64
    %v67 = vmul.f32 %v53, %v65
    %v68 = vadd.f32 %v62, %v66
    %v69 = vadd.f32 %v63, %v67
    %v70 = vld [vmem:[#allocation5 + $0x30] sm:$0xff]
    %v71 = vld [vmem:[#allocation5 + $0x38] sm:$0xff]
    %v72 = vmul.f32 %v46, %v70
    %v73 = vmul.f32 %v45, %v71
    %v74 = vld [vmem:[#allocation5 + $0x40] sm:$0xff]
    %v75 = vld [vmem:[#allocation5 + $0x48] sm:$0xff]
    %v76 = vmul.f32 %v36, %v74
    %v77 = vmul.f32 %v37, %v75
    %v78 = vadd.f32 %v72, %v76
    %v79 = vadd.f32 %v73, %v77
    %v80 = vld [vmem:[#allocation5 + $0x50] sm:$0xff]
    %v81 = vld [vmem:[#allocation5 + $0x58] sm:$0xff]
    %v82 = vmul.f32 %v52, %v80
    %v83 = vmul.f32 %v53, %v81
    %v84 = vadd.f32 %v78, %v82
    %v85 = vadd.f32 %v79, %v83
    %v86 = vld [vmem:[#allocation5 + $0x60] sm:$0xff]
    %v87 = vld [vmem:[#allocation5 + $0x68] sm:$0xff]
    %v88 = vmul.f32 %v46, %v86
    %v89 = vmul.f32 %v45, %v87
    %v90 = vld [vmem:[#allocation5 + $0x70] sm:$0xff]
    %v91 = vld [vmem:[#allocation5 + $0x78] sm:$0xff]
    %v92 = vmul.f32 %v36, %v90
    %v93 = vmul.f32 %v37, %v91
    %v94 = vadd.f32 %v88, %v92
    %v95 = vadd.f32 %v89, %v93
    %v96 = vld [vmem:[#allocation5 + $0x80] sm:$0xff]
    %v97 = vld [vmem:[#allocation5 + $0x88] sm:$0xff]
    %v98 = vmul.f32 %v52, %v96
    %v99 = vmul.f32 %v53, %v97
    %v100 = vadd.f32 %v94, %v98
    %v101 = vadd.f32 %v95, %v99
    %102 = vrot.lane.b32.xlu0 %v68, 16
    %v103 = vpop.permute.xlu0 %102
    %104 = vrot.lane.b32.xlu0 %v69, 16
    %v105 = vpop.permute.xlu0 %104
    %vm106 = vcmp.lt.s32.totalorder %v43, 16
    %v107 = vsel %vm106, %v103, %v105
    %v108 = vsel %vm106, %v105, %v103
    %v109 = vadd.f32 %v84, %v108
    %v110 = vadd.f32 %v85, %v107
    %111 = vrot.lane.b32.xlu0 %v100, 112
    %v112 = vpop.permute.xlu0 %111
    %113 = vrot.lane.b32.xlu0 %v101, 112
    %v114 = vpop.permute.xlu0 %113
    %vm115 = vcmp.lt.s32.totalorder %v43, 112
    %v116 = vsel %vm115, %v112, %v114
    %v117 = vsel %vm115, %v114, %v112
    %v118 = vadd.f32 %v109, %v116
    %v119 = vadd.f32 %v110, %v117
    %v120 = vld [vmem:[#allocation5 + $0x90] sm:$0xff]
    %v121 = vld [vmem:[#allocation5 + $0x98] sm:$0xff]
    %v122 = vld [vmem:[#allocation5 + $0xa0] sm:$0xff]
    %v123 = vld [vmem:[#allocation5 + $0xa8] sm:$0xff]
    %v124 = vld [vmem:[#allocation5 + $0xb0] sm:$0xff]
    %v125 = vadd.f32 %v118, %v120
    %v126 = vadd.f32 %v119, %v121
    %v127 = vmax.f32 %v125, 0.0
    %v128 = vmax.f32 %v126, 0.0
    %vm129 = vcmask 64512
    %v131 = vsel %vm129, %v124, 0
    %133 = vmatprep.subr.mxu0 %v128
    %134 = vmatpush1.msra.mxu0 %v127
    %135 = vmatprep.subr.mxu0 0.0
    %136 = vmatpush1.msra.mxu0 0.0
    %137 = vmatprep.subr.mxu0 0.0
    %138 = vmatpush1.msra.mxu0 0.0
    %139 = vmatprep.subr.mxu0 0.0
    %140 = vmatpush1.msra.mxu0 0.0
    %141 = vmatprep.subr.mxu0 0.0
    %142 = vmatpush1.msra.mxu0 0.0
    %143 = vmatprep.subr.mxu0 0.0
    %144 = vmatpush1.msra.mxu0 0.0
    %145 = vmatprep.subr.mxu0 0.0
    %146 = vmatpush1.msra.mxu0 0.0
    %147 = vmatprep.subr.mxu0 0.0
    %148 = vmatpush1.msra.mxu0 0.0
    %149 = vmatprep.subr.mxu0 0.0
    %150 = vmatpush1.msra.mxu0 0.0
    %151 = vmatprep.subr.mxu0 0.0
    %152 = vmatpush1.msra.mxu0 0.0
    %153 = vmatprep.subr.mxu0 0.0
    %154 = vmatpush1.msra.mxu0 0.0
    %155 = vmatprep.subr.mxu0 0.0
    %156 = vmatpush1.msra.mxu0 0.0
    %157 = vmatprep.subr.mxu0 0.0
    %158 = vmatpush1.msra.mxu0 0.0
    %159 = vmatprep.subr.mxu0 0.0
    %160 = vmatpush1.msra.mxu0 0.0
    %161 = vmatprep.subr.mxu0 0.0
    %162 = vmatpush1.msra.mxu0 0.0
    %163 = vmatprep.subr.mxu0 0.0
    %164 = vmatpush1.msra.mxu0 0.0
    %165 = vmatprep.subr.mxu0 0.0
    %166 = vmatpush1.msra.mxu0 0.0
    %167 = vmatprep.subr.mxu0 0.0
    %168 = vmatpush1.msra.mxu0 0.0
    %169 = vmatprep.subr.mxu0 0.0
    %170 = vmatpush1.msra.mxu0 0.0
    %171 = vmatprep.subr.mxu0 0.0
    %172 = vmatpush1.msra.mxu0 0.0
    %173 = vmatprep.subr.mxu0 0.0
    %174 = vmatpush1.msra.mxu0 0.0
    %175 = vmatprep.subr.mxu0 0.0
    %176 = vmatpush1.msra.mxu0 0.0
    %177 = vmatprep.subr.mxu0 0.0
    %178 = vmatpush1.msra.mxu0 0.0
    %179 = vmatprep.subr.mxu0 0.0
    %180 = vmatpush1.msra.mxu0 0.0
    %181 = vmatprep.subr.mxu0 0.0
    %182 = vmatpush1.msra.mxu0 0.0
    %183 = vmatprep.subr.mxu0 0.0
    %184 = vmatpush1.msra.mxu0 0.0
    %185 = vmatprep.subr.mxu0 0.0
    %186 = vmatpush1.msra.mxu0 0.0
    %187 = vmatprep.subr.mxu0 0.0
    %188 = vmatpush1.msra.mxu0 0.0
    %189 = vmatprep.subr.mxu0 0.0
    %190 = vmatpush1.msra.mxu0 0.0
    %191 = vmatprep.subr.mxu0 0.0
    %192 = vmatpush1.msra.mxu0 0.0
    %193 = vmatprep.subr.mxu0 0.0
    %194 = vmatpush1.msra.mxu0 0.0
    %195 = vmatprep.subr.mxu0 0.0
    %196 = vmatpush1.msra.mxu0 0.0
    %197 = vmatprep.mubr.f32.mxu0 0.0
    %198 = vmatmul.mubr.f32.gmra.mrb[0].mxu0 %v131
    %v199 = vpop.f32.mrb[0].mxu0
    %v200 = vadd.f32 %v122, %v199
    %v201 = vpop.f32.mrb[0].mxu0
    %v202 = vadd.f32 %v123, %v201
    %203 = vdwg.mxu0
    %v204 = vsub.f32 %v36, %v200
    %v205 = vsub.f32 %v37, %v202
    %206 = vst [vmem:[#allocation7] sm:$0xff] %v204
    %207 = vst [vmem:[#allocation7 + $0x8] sm:$0xff] %v205
    // Predicated region
    $region18: #{tpu_custom_call.1} parent=1 // pred_check
      _
    $region19: #{tpu_custom_call.1} parent=1 // pred_check_branch
      %209 = sbr.rel (0) target = $region21
    $region20: #{tpu_custom_call.1} parent=1 // pred_region
      %s211 = ssub.s32 256, 256
      %212 = vsyncadd [#allocation4], %s211
      %s214 = sshll.u32 [#allocation7], 4
      %s215 = int_to_ptr.vmem [resolvable:$true] %s214
      %217 = dma.vmem_to_hbm [thread:$0]  %s215, 256, %s2, [#allocation4]
    $region21: #{tpu_custom_call.1} parent=1 // pred_fallthru
      _
    // Predicated region
    $region22: #{tpu_custom_call.1} parent=1 // pred_check
      _
    $region23: #{tpu_custom_call.1} parent=1 // pred_check_branch
      %219 = sbr.rel (0) target = $region25
    $region24: #{tpu_custom_call.1} parent=1 // pred_region
      %220 = dma.done [#allocation4], 256
    $region25: #{tpu_custom_call.1} parent=1 // pred_fallthru
      _
    %221 = vsyncpa [#allocation3], 1
    %222 = vsyncpa [#allocation6], 1
    %223 = vsyncpa [#allocation4], 1

</llo_original>
